<compile_context>
chip_gen: v5e
topology: v5e:2x2
jax: 0.10.0
libtpu: 0.0.40
codegen_flags: <defaults>
</compile_context>

<pallas_src>
import functools

import jax
import jax.numpy as jnp
from jax.experimental import pallas as pl
from jax.experimental.pallas import tpu as pltpu

INPUT_SIZE = 11
N_NEURONS = 128
N_HIDDEN = 5
OUTPUT_SIZE = 3


def mlp_kernel(x_ref, w_in_ref, b_in_ref, w_h_ref, b_h_ref,
               w_out_ref, b_out_ref, o_ref):
    tb = x_ref.shape[0]
    half = tb // 2                      # tb is always a multiple of 16

    # Load weights/biases once per grid step (they are VMEM-resident tiles).
    w_in = w_in_ref[...]
    b_in = b_in_ref[...]
    w_out = w_out_ref[...]
    b_out = b_out_ref[...]

    # Two independent half-tile chains: gives the scheduler freedom to overlap
    # VPU work (bias add / ReLU / bf16 cast) of one half with MXU matmuls of
    # the other half. Numerics are identical to a single chain (row-wise ops).
    hs = []
    for lo in (0, half):
        xs = x_ref[lo:lo + half, :].astype(jnp.bfloat16)
        h = jnp.dot(xs, w_in, preferred_element_type=jnp.float32) + b_in
        hs.append(jnp.maximum(h, 0.0))

    for i in range(N_HIDDEN):           # static unroll over stacked weights
        w_i = w_h_ref[i]
        b_i = b_h_ref[i]
        for c in range(2):
            h = jnp.dot(hs[c].astype(jnp.bfloat16), w_i,
                        preferred_element_type=jnp.float32) + b_i
            hs[c] = jnp.maximum(h, 0.0)

    # Output layer (no activation).
    for c, lo in enumerate((0, half)):
        out = jnp.dot(hs[c].astype(jnp.bfloat16), w_out,
                      preferred_element_type=jnp.float32) + b_out
        o_ref[lo:lo + half, :] = out.astype(o_ref.dtype)


def _pick_tb(batch, tb):
    """Pick the effective batch tile (multiple of 16 so in-kernel halves stay
    8-row aligned), without overshooting the batch, and guaranteeing >=2 grid
    blocks when the batch allows it (v7x megacore sharding)."""
    tb = max(16, (int(tb) // 16) * 16)
    tb = min(tb, ((batch + 15) // 16) * 16)      # don't tile far past batch
    tb = max(tb, 16)
    if batch > 16 and (batch + tb - 1) // tb < 2:
        tb = max(16, ((batch // 2) // 16) * 16)  # force >=2 blocks
    return tb


@functools.partial(jax.jit, static_argnames=("tb",))
def mlp_forward(x, w_in, b_in, w_h, b_h, w_out, b_out, *, tb=2048):
    batch = x.shape[0]
    tb = _pick_tb(batch, tb)
    n_blocks = pl.cdiv(batch, tb)       # partial trailing block handled by Pallas

    const2 = lambda i: (0, 0)
    const3 = lambda i: (0, 0, 0)

    flops = 2 * batch * (INPUT_SIZE * N_NEURONS
                         + N_HIDDEN * N_NEURONS * N_NEURONS
                         + N_NEURONS * OUTPUT_SIZE)
    weight_bytes = (w_in.size * 2 + w_h.size * 2 + w_out.size * 2
                    + b_in.size * 4 + b_h.size * 4 + b_out.size * 4)
    bytes_accessed = batch * (INPUT_SIZE + OUTPUT_SIZE) * 4 + weight_bytes

    return pl.pallas_call(
        mlp_kernel,
        out_shape=jax.ShapeDtypeStruct((batch, OUTPUT_SIZE), jnp.float32),
        grid=(n_blocks,),
        in_specs=[
            pl.BlockSpec((tb, INPUT_SIZE), lambda i: (i, 0)),            # x tile
            pl.BlockSpec((INPUT_SIZE, N_NEURONS), const2),               # w_in (resident)
            pl.BlockSpec((1, N_NEURONS), const2),                        # b_in
            pl.BlockSpec((N_HIDDEN, N_NEURONS, N_NEURONS), const3),      # w_h
            pl.BlockSpec((N_HIDDEN, 1, N_NEURONS), const3),              # b_h
            pl.BlockSpec((N_NEURONS, OUTPUT_SIZE), const2),              # w_out
            pl.BlockSpec((1, OUTPUT_SIZE), const2),                      # b_out
        ],
        out_specs=pl.BlockSpec((tb, OUTPUT_SIZE), lambda i: (i, 0)),
        compiler_params=pltpu.CompilerParams(
            dimension_semantics=("parallel",),     # megacore sharding on v7x
            vmem_limit_bytes=32 << 20,             # real footprint is a few MiB
        ),
        cost_estimate=pl.CostEstimate(
            flops=flops, transcendentals=0, bytes_accessed=bytes_accessed),
    )(x, w_in, b_in, w_h, b_h, w_out, b_out)


def init_params(key):
    """Deterministic init mimicking PyTorch nn.Linear default (uniform +-1/sqrt(fan_in)).
    Weights stored transposed (in_features, out_features) in bf16 (MXU operands);
    biases kept in f32 so elementwise math stays on the native f32 VPU path."""
    ks = jax.random.split(key, 4 + 2 * N_HIDDEN)

    def lin(kw, kb, fan_in, fan_out):
        bound = 1.0 / jnp.sqrt(jnp.float32(fan_in))
        w = jax.random.uniform(kw, (fan_in, fan_out), jnp.float32, -bound, bound)
        b = jax.random.uniform(kb, (1, fan_out), jnp.float32, -bound, bound)
        return w.astype(jnp.bfloat16), b

    w_in, b_in = lin(ks[0], ks[1], INPUT_SIZE, N_NEURONS)
    w_h_list, b_h_list = [], []
    for i in range(N_HIDDEN):
        w, b = lin(ks[2 + 2 * i], ks[3 + 2 * i], N_NEURONS, N_NEURONS)
        w_h_list.append(w)
        b_h_list.append(b)
    w_h = jnp.stack(w_h_list, axis=0)          # (5, 128, 128) bf16
    b_h = jnp.stack(b_h_list, axis=0)          # (5, 1, 128)  f32
    w_out, b_out = lin(ks[2 + 2 * N_HIDDEN], ks[3 + 2 * N_HIDDEN],
                       N_NEURONS, OUTPUT_SIZE)
    return w_in, b_in, w_h, b_h, w_out, b_out


def mlp_reference(x, w_in, b_in, w_h, b_h, w_out, b_out):
    # Same numerics as the kernel: bf16 matmul operands, f32 accumulation.
    h = jnp.dot(x.astype(jnp.bfloat16), w_in,
                preferred_element_type=jnp.float32) + b_in
    h = jnp.maximum(h, 0.0)
    for i in range(N_HIDDEN):
        h = jnp.dot(h.astype(jnp.bfloat16), w_h[i],
                    preferred_element_type=jnp.float32) + b_h[i]
        h = jnp.maximum(h, 0.0)
    return jnp.dot(h.astype(jnp.bfloat16), w_out,
                   preferred_element_type=jnp.float32) + b_out


if __name__ == "__main__":
    key = jax.random.PRNGKey(0)
    k_x, k_p = jax.random.split(key)
    params = init_params(k_p)

    # Small, deliberately non-multiple-of-tile batch: exercises a 3-step grid,
    # a masked partial trailing block (no wrapper-side padding), and the
    # in-kernel half-tile split (tb=16 -> two 8-row chains).
    batch = 37
    x = jax.random.normal(k_x, (batch, INPUT_SIZE), jnp.float32)
    out = jax.block_until_ready(mlp_forward(x, *params, tb=16))
    ref = mlp_reference(x, *params)
    assert out.shape == (batch, OUTPUT_SIZE)
    assert jnp.allclose(out, ref, atol=1e-2, rtol=1e-2), \
        f"max abs err {jnp.max(jnp.abs(out - ref))}"

    # Default-tile path: tb=2048 gets clamped to 48 so the grid still has >=2
    # blocks (megacore) and the trailing block stays masked, not padded.
    batch2 = 100
    x2 = jax.random.normal(k_x, (batch2, INPUT_SIZE), jnp.float32)
    out2 = jax.block_until_ready(mlp_forward(x2, *params))
    ref2 = mlp_reference(x2, *params)
    assert out2.shape == (batch2, OUTPUT_SIZE)
    assert jnp.allclose(out2, ref2, atol=1e-2, rtol=1e-2), \
        f"max abs err {jnp.max(jnp.abs(out2 - ref2))}"

    print("KERNEL_OK")
</pallas_src>

<mosaic_0001>
module attributes {stable_mosaic.version = 11 : i64} {
  func.func @mlp_kernel(%arg0: i32, %arg1: memref<16x11xf32, #tpu.memory_space<vmem>>, %arg2: memref<11x128xbf16, #tpu.memory_space<vmem>>, %arg3: memref<1x128xf32, #tpu.memory_space<vmem>>, %arg4: memref<5x128x128xbf16, #tpu.memory_space<vmem>>, %arg5: memref<5x1x128xf32, #tpu.memory_space<vmem>>, %arg6: memref<128x3xbf16, #tpu.memory_space<vmem>>, %arg7: memref<1x3xf32, #tpu.memory_space<vmem>>, %arg8: memref<16x3xf32, #tpu.memory_space<vmem>>) attributes {dimension_semantics = [#tpu.dimension_semantics<parallel>], iteration_bounds = array<i64: 3>, scalar_prefetch = 0 : i64, scratch_operands = 0 : i64, tpu.core_type = #tpu.core_type<tc>, window_params = [{transform_indices = @transform_0, window_bounds = array<i64: 16, 11>}, {pipeline_mode = #tpu.pipeline_mode<synchronous>, transform_indices = @transform_1, window_bounds = array<i64: 11, 128>}, {pipeline_mode = #tpu.pipeline_mode<synchronous>, transform_indices = @transform_2, window_bounds = array<i64: 1, 128>}, {pipeline_mode = #tpu.pipeline_mode<synchronous>, transform_indices = @transform_3, window_bounds = array<i64: 5, 128, 128>}, {pipeline_mode = #tpu.pipeline_mode<synchronous>, transform_indices = @transform_4, window_bounds = array<i64: 5, 1, 128>}, {pipeline_mode = #tpu.pipeline_mode<synchronous>, transform_indices = @transform_5, window_bounds = array<i64: 128, 3>}, {pipeline_mode = #tpu.pipeline_mode<synchronous>, transform_indices = @transform_6, window_bounds = array<i64: 1, 3>}, {transform_indices = @transform_7, window_bounds = array<i64: 16, 3>}]} {
    %c0 = arith.constant 0 : index
    %c0_0 = arith.constant 0 : index
    %0 = vector.load %arg2[%c0, %c0_0] : memref<11x128xbf16, #tpu.memory_space<vmem>>, vector<11x128xbf16>
    %c0_1 = arith.constant 0 : index
    %c0_2 = arith.constant 0 : index
    %1 = vector.load %arg3[%c0_1, %c0_2] : memref<1x128xf32, #tpu.memory_space<vmem>>, vector<1x128xf32>
    %c0_3 = arith.constant 0 : index
    %c0_4 = arith.constant 0 : index
    %2 = vector.load %arg6[%c0_3, %c0_4] : memref<128x3xbf16, #tpu.memory_space<vmem>>, vector<128x3xbf16>
    %c0_5 = arith.constant 0 : index
    %c0_6 = arith.constant 0 : index
    %3 = vector.load %arg7[%c0_5, %c0_6] : memref<1x3xf32, #tpu.memory_space<vmem>>, vector<1x3xf32>
    %c0_7 = arith.constant 0 : index
    %c0_8 = arith.constant 0 : index
    %4 = vector.load %arg1[%c0_7, %c0_8] : memref<16x11xf32, #tpu.memory_space<vmem>>, vector<8x11xf32>
    %5 = arith.truncf %4 : vector<8x11xf32> to vector<8x11xbf16>
    %cst = arith.constant dense<0.000000e+00> : vector<8x128xf32>
    %6 = tpu.matmul %5, %0, %cst {dimension_numbers = #tpu.dot_dimension_numbers<[1], [0], [0], [1], [0, 0, 1, 1], [], []>} : vector<8x11xbf16>, vector<11x128xbf16>, vector<8x128xf32> -> vector<8x128xf32>
    %7 = vector.broadcast %1 : vector<1x128xf32> to vector<8x128xf32>
    %8 = arith.addf %6, %7 : vector<8x128xf32>
    %cst_9 = arith.constant 0.000000e+00 : f32
    %9 = vector.broadcast %cst_9 : f32 to vector<8x128xf32>
    %10 = arith.maximumf %8, %9 : vector<8x128xf32>
    %c8 = arith.constant 8 : index
    %c0_10 = arith.constant 0 : index
    %11 = vector.load %arg1[%c8, %c0_10] : memref<16x11xf32, #tpu.memory_space<vmem>>, vector<8x11xf32>
    %12 = arith.truncf %11 : vector<8x11xf32> to vector<8x11xbf16>
    %cst_11 = arith.constant dense<0.000000e+00> : vector<8x128xf32>
    %13 = tpu.matmul %12, %0, %cst_11 {dimension_numbers = #tpu.dot_dimension_numbers<[1], [0], [0], [1], [0, 0, 1, 1], [], []>} : vector<8x11xbf16>, vector<11x128xbf16>, vector<8x128xf32> -> vector<8x128xf32>
    %14 = vector.broadcast %1 : vector<1x128xf32> to vector<8x128xf32>
    %15 = arith.addf %13, %14 : vector<8x128xf32>
    %cst_12 = arith.constant 0.000000e+00 : f32
    %16 = vector.broadcast %cst_12 : f32 to vector<8x128xf32>
    %17 = arith.maximumf %15, %16 : vector<8x128xf32>
    %c0_13 = arith.constant 0 : index
    %c0_14 = arith.constant 0 : index
    %c0_15 = arith.constant 0 : index
    %18 = vector.load %arg4[%c0_13, %c0_14, %c0_15] : memref<5x128x128xbf16, #tpu.memory_space<vmem>>, vector<1x128x128xbf16>
    %19 = vector.shape_cast %18 : vector<1x128x128xbf16> to vector<128x128xbf16>
    %c0_16 = arith.constant 0 : index
    %c0_17 = arith.constant 0 : index
    %c0_18 = arith.constant 0 : index
    %20 = vector.load %arg5[%c0_16, %c0_17, %c0_18] : memref<5x1x128xf32, #tpu.memory_space<vmem>>, vector<1x1x128xf32>
    %21 = vector.shape_cast %20 : vector<1x1x128xf32> to vector<1x128xf32>
    %22 = arith.truncf %10 : vector<8x128xf32> to vector<8x128xbf16>
    %cst_19 = arith.constant dense<0.000000e+00> : vector<8x128xf32>
    %23 = tpu.matmul %22, %19, %cst_19 {dimension_numbers = #tpu.dot_dimension_numbers<[1], [0], [0], [1], [0, 0, 1, 1], [], []>} : vector<8x128xbf16>, vector<128x128xbf16>, vector<8x128xf32> -> vector<8x128xf32>
    %24 = vector.broadcast %21 : vector<1x128xf32> to vector<8x128xf32>
    %25 = arith.addf %23, %24 : vector<8x128xf32>
    %cst_20 = arith.constant 0.000000e+00 : f32
    %26 = vector.broadcast %cst_20 : f32 to vector<8x128xf32>
    %27 = arith.maximumf %25, %26 : vector<8x128xf32>
    %28 = arith.truncf %17 : vector<8x128xf32> to vector<8x128xbf16>
    %cst_21 = arith.constant dense<0.000000e+00> : vector<8x128xf32>
    %29 = tpu.matmul %28, %19, %cst_21 {dimension_numbers = #tpu.dot_dimension_numbers<[1], [0], [0], [1], [0, 0, 1, 1], [], []>} : vector<8x128xbf16>, vector<128x128xbf16>, vector<8x128xf32> -> vector<8x128xf32>
    %30 = vector.broadcast %21 : vector<1x128xf32> to vector<8x128xf32>
    %31 = arith.addf %29, %30 : vector<8x128xf32>
    %cst_22 = arith.constant 0.000000e+00 : f32
    %32 = vector.broadcast %cst_22 : f32 to vector<8x128xf32>
    %33 = arith.maximumf %31, %32 : vector<8x128xf32>
    %c1 = arith.constant 1 : index
    %c0_23 = arith.constant 0 : index
    %c0_24 = arith.constant 0 : index
    %34 = vector.load %arg4[%c1, %c0_23, %c0_24] : memref<5x128x128xbf16, #tpu.memory_space<vmem>>, vector<1x128x128xbf16>
    %35 = vector.shape_cast %34 : vector<1x128x128xbf16> to vector<128x128xbf16>
    %c1_25 = arith.constant 1 : index
    %c0_26 = arith.constant 0 : index
    %c0_27 = arith.constant 0 : index
    %36 = vector.load %arg5[%c1_25, %c0_26, %c0_27] : memref<5x1x128xf32, #tpu.memory_space<vmem>>, vector<1x1x128xf32>
    %37 = vector.shape_cast %36 : vector<1x1x128xf32> to vector<1x128xf32>
    %38 = arith.truncf %27 : vector<8x128xf32> to vector<8x128xbf16>
    %cst_28 = arith.constant dense<0.000000e+00> : vector<8x128xf32>
    %39 = tpu.matmul %38, %35, %cst_28 {dimension_numbers = #tpu.dot_dimension_numbers<[1], [0], [0], [1], [0, 0, 1, 1], [], []>} : vector<8x128xbf16>, vector<128x128xbf16>, vector<8x128xf32> -> vector<8x128xf32>
    %40 = vector.broadcast %37 : vector<1x128xf32> to vector<8x128xf32>
    %41 = arith.addf %39, %40 : vector<8x128xf32>
    %cst_29 = arith.constant 0.000000e+00 : f32
    %42 = vector.broadcast %cst_29 : f32 to vector<8x128xf32>
    %43 = arith.maximumf %41, %42 : vector<8x128xf32>
    %44 = arith.truncf %33 : vector<8x128xf32> to vector<8x128xbf16>
    %cst_30 = arith.constant dense<0.000000e+00> : vector<8x128xf32>
    %45 = tpu.matmul %44, %35, %cst_30 {dimension_numbers = #tpu.dot_dimension_numbers<[1], [0], [0], [1], [0, 0, 1, 1], [], []>} : vector<8x128xbf16>, vector<128x128xbf16>, vector<8x128xf32> -> vector<8x128xf32>
    %46 = vector.broadcast %37 : vector<1x128xf32> to vector<8x128xf32>
    %47 = arith.addf %45, %46 : vector<8x128xf32>
    %cst_31 = arith.constant 0.000000e+00 : f32
    %48 = vector.broadcast %cst_31 : f32 to vector<8x128xf32>
    %49 = arith.maximumf %47, %48 : vector<8x128xf32>
    %c2 = arith.constant 2 : index
    %c0_32 = arith.constant 0 : index
    %c0_33 = arith.constant 0 : index
    %50 = vector.load %arg4[%c2, %c0_32, %c0_33] : memref<5x128x128xbf16, #tpu.memory_space<vmem>>, vector<1x128x128xbf16>
    %51 = vector.shape_cast %50 : vector<1x128x128xbf16> to vector<128x128xbf16>
    %c2_34 = arith.constant 2 : index
    %c0_35 = arith.constant 0 : index
    %c0_36 = arith.constant 0 : index
    %52 = vector.load %arg5[%c2_34, %c0_35, %c0_36] : memref<5x1x128xf32, #tpu.memory_space<vmem>>, vector<1x1x128xf32>
    %53 = vector.shape_cast %52 : vector<1x1x128xf32> to vector<1x128xf32>
    %54 = arith.truncf %43 : vector<8x128xf32> to vector<8x128xbf16>
    %cst_37 = arith.constant dense<0.000000e+00> : vector<8x128xf32>
    %55 = tpu.matmul %54, %51, %cst_37 {dimension_numbers = #tpu.dot_dimension_numbers<[1], [0], [0], [1], [0, 0, 1, 1], [], []>} : vector<8x128xbf16>, vector<128x128xbf16>, vector<8x128xf32> -> vector<8x128xf32>
    %56 = vector.broadcast %53 : vector<1x128xf32> to vector<8x128xf32>
    %57 = arith.addf %55, %56 : vector<8x128xf32>
    %cst_38 = arith.constant 0.000000e+00 : f32
    %58 = vector.broadcast %cst_38 : f32 to vector<8x128xf32>
    %59 = arith.maximumf %57, %58 : vector<8x128xf32>
    %60 = arith.truncf %49 : vector<8x128xf32> to vector<8x128xbf16>
    %cst_39 = arith.constant dense<0.000000e+00> : vector<8x128xf32>
    %61 = tpu.matmul %60, %51, %cst_39 {dimension_numbers = #tpu.dot_dimension_numbers<[1], [0], [0], [1], [0, 0, 1, 1], [], []>} : vector<8x128xbf16>, vector<128x128xbf16>, vector<8x128xf32> -> vector<8x128xf32>
    %62 = vector.broadcast %53 : vector<1x128xf32> to vector<8x128xf32>
    %63 = arith.addf %61, %62 : vector<8x128xf32>
    %cst_40 = arith.constant 0.000000e+00 : f32
    %64 = vector.broadcast %cst_40 : f32 to vector<8x128xf32>
    %65 = arith.maximumf %63, %64 : vector<8x128xf32>
    %c3 = arith.constant 3 : index
    %c0_41 = arith.constant 0 : index
    %c0_42 = arith.constant 0 : index
    %66 = vector.load %arg4[%c3, %c0_41, %c0_42] : memref<5x128x128xbf16, #tpu.memory_space<vmem>>, vector<1x128x128xbf16>
    %67 = vector.shape_cast %66 : vector<1x128x128xbf16> to vector<128x128xbf16>
    %c3_43 = arith.constant 3 : index
    %c0_44 = arith.constant 0 : index
    %c0_45 = arith.constant 0 : index
    %68 = vector.load %arg5[%c3_43, %c0_44, %c0_45] : memref<5x1x128xf32, #tpu.memory_space<vmem>>, vector<1x1x128xf32>
    %69 = vector.shape_cast %68 : vector<1x1x128xf32> to vector<1x128xf32>
    %70 = arith.truncf %59 : vector<8x128xf32> to vector<8x128xbf16>
    %cst_46 = arith.constant dense<0.000000e+00> : vector<8x128xf32>
    %71 = tpu.matmul %70, %67, %cst_46 {dimension_numbers = #tpu.dot_dimension_numbers<[1], [0], [0], [1], [0, 0, 1, 1], [], []>} : vector<8x128xbf16>, vector<128x128xbf16>, vector<8x128xf32> -> vector<8x128xf32>
    %72 = vector.broadcast %69 : vector<1x128xf32> to vector<8x128xf32>
    %73 = arith.addf %71, %72 : vector<8x128xf32>
    %cst_47 = arith.constant 0.000000e+00 : f32
    %74 = vector.broadcast %cst_47 : f32 to vector<8x128xf32>
    %75 = arith.maximumf %73, %74 : vector<8x128xf32>
    %76 = arith.truncf %65 : vector<8x128xf32> to vector<8x128xbf16>
    %cst_48 = arith.constant dense<0.000000e+00> : vector<8x128xf32>
    %77 = tpu.matmul %76, %67, %cst_48 {dimension_numbers = #tpu.dot_dimension_numbers<[1], [0], [0], [1], [0, 0, 1, 1], [], []>} : vector<8x128xbf16>, vector<128x128xbf16>, vector<8x128xf32> -> vector<8x128xf32>
    %78 = vector.broadcast %69 : vector<1x128xf32> to vector<8x128xf32>
    %79 = arith.addf %77, %78 : vector<8x128xf32>
    %cst_49 = arith.constant 0.000000e+00 : f32
    %80 = vector.broadcast %cst_49 : f32 to vector<8x128xf32>
    %81 = arith.maximumf %79, %80 : vector<8x128xf32>
    %c4 = arith.constant 4 : index
    %c0_50 = arith.constant 0 : index
    %c0_51 = arith.constant 0 : index
    %82 = vector.load %arg4[%c4, %c0_50, %c0_51] : memref<5x128x128xbf16, #tpu.memory_space<vmem>>, vector<1x128x128xbf16>
    %83 = vector.shape_cast %82 : vector<1x128x128xbf16> to vector<128x128xbf16>
    %c4_52 = arith.constant 4 : index
    %c0_53 = arith.constant 0 : index
    %c0_54 = arith.constant 0 : index
    %84 = vector.load %arg5[%c4_52, %c0_53, %c0_54] : memref<5x1x128xf32, #tpu.memory_space<vmem>>, vector<1x1x128xf32>
    %85 = vector.shape_cast %84 : vector<1x1x128xf32> to vector<1x128xf32>
    %86 = arith.truncf %75 : vector<8x128xf32> to vector<8x128xbf16>
    %cst_55 = arith.constant dense<0.000000e+00> : vector<8x128xf32>
    %87 = tpu.matmul %86, %83, %cst_55 {dimension_numbers = #tpu.dot_dimension_numbers<[1], [0], [0], [1], [0, 0, 1, 1], [], []>} : vector<8x128xbf16>, vector<128x128xbf16>, vector<8x128xf32> -> vector<8x128xf32>
    %88 = vector.broadcast %85 : vector<1x128xf32> to vector<8x128xf32>
    %89 = arith.addf %87, %88 : vector<8x128xf32>
    %cst_56 = arith.constant 0.000000e+00 : f32
    %90 = vector.broadcast %cst_56 : f32 to vector<8x128xf32>
    %91 = arith.maximumf %89, %90 : vector<8x128xf32>
    %92 = arith.truncf %81 : vector<8x128xf32> to vector<8x128xbf16>
    %cst_57 = arith.constant dense<0.000000e+00> : vector<8x128xf32>
    %93 = tpu.matmul %92, %83, %cst_57 {dimension_numbers = #tpu.dot_dimension_numbers<[1], [0], [0], [1], [0, 0, 1, 1], [], []>} : vector<8x128xbf16>, vector<128x128xbf16>, vector<8x128xf32> -> vector<8x128xf32>
    %94 = vector.broadcast %85 : vector<1x128xf32> to vector<8x128xf32>
    %95 = arith.addf %93, %94 : vector<8x128xf32>
    %cst_58 = arith.constant 0.000000e+00 : f32
    %96 = vector.broadcast %cst_58 : f32 to vector<8x128xf32>
    %97 = arith.maximumf %95, %96 : vector<8x128xf32>
    %98 = arith.truncf %91 : vector<8x128xf32> to vector<8x128xbf16>
    %cst_59 = arith.constant dense<0.000000e+00> : vector<8x3xf32>
    %99 = tpu.matmul %98, %2, %cst_59 {dimension_numbers = #tpu.dot_dimension_numbers<[1], [0], [0], [1], [0, 0, 1, 1], [], []>} : vector<8x128xbf16>, vector<128x3xbf16>, vector<8x3xf32> -> vector<8x3xf32>
    %100 = vector.broadcast %3 : vector<1x3xf32> to vector<8x3xf32>
    %101 = arith.addf %99, %100 : vector<8x3xf32>
    %c0_60 = arith.constant 0 : index
    %c0_61 = arith.constant 0 : index
    %102 = vector.load %arg8[%c0_60, %c0_61] : memref<16x3xf32, #tpu.memory_space<vmem>>, vector<8x3xf32>
    tpu.vector_store %arg8[%c0_60, %c0_61], %101 {strides = array<i32>} : memref<16x3xf32, #tpu.memory_space<vmem>>, vector<8x3xf32>,
    %103 = arith.truncf %97 : vector<8x128xf32> to vector<8x128xbf16>
    %cst_62 = arith.constant dense<0.000000e+00> : vector<8x3xf32>
    %104 = tpu.matmul %103, %2, %cst_62 {dimension_numbers = #tpu.dot_dimension_numbers<[1], [0], [0], [1], [0, 0, 1, 1], [], []>} : vector<8x128xbf16>, vector<128x3xbf16>, vector<8x3xf32> -> vector<8x3xf32>
    %105 = vector.broadcast %3 : vector<1x3xf32> to vector<8x3xf32>
    %106 = arith.addf %104, %105 : vector<8x3xf32>
    %c8_63 = arith.constant 8 : index
    %c0_64 = arith.constant 0 : index
    %107 = vector.load %arg8[%c8_63, %c0_64] : memref<16x3xf32, #tpu.memory_space<vmem>>, vector<8x3xf32>
    tpu.vector_store %arg8[%c8_63, %c0_64], %106 {strides = array<i32>} : memref<16x3xf32, #tpu.memory_space<vmem>>, vector<8x3xf32>,
    return
  }
  func.func @transform_0(%arg0: i32) -> (i32, i32) {
    %c0_i32 = arith.constant 0 : i32
    %c0_i32_0 = arith.constant 0 : i32
    return %arg0, %c0_i32 : i32, i32
  }
  func.func @transform_1(%arg0: i32) -> (i32, i32) {
    %c0_i32 = arith.constant 0 : i32
    %c0_i32_0 = arith.constant 0 : i32
    %c0_i32_1 = arith.constant 0 : i32
    return %c0_i32, %c0_i32_0 : i32, i32
  }
  func.func @transform_2(%arg0: i32) -> (i32, i32) {
    %c0_i32 = arith.constant 0 : i32
    %c0_i32_0 = arith.constant 0 : i32
    %c0_i32_1 = arith.constant 0 : i32
    return %c0_i32, %c0_i32_0 : i32, i32
  }
  func.func @transform_3(%arg0: i32) -> (i32, i32, i32) {
    %c0_i32 = arith.constant 0 : i32
    %c0_i32_0 = arith.constant 0 : i32
    %c0_i32_1 = arith.constant 0 : i32
    %c0_i32_2 = arith.constant 0 : i32
    return %c0_i32, %c0_i32_0, %c0_i32_1 : i32, i32, i32
  }
  func.func @transform_4(%arg0: i32) -> (i32, i32, i32) {
    %c0_i32 = arith.constant 0 : i32
    %c0_i32_0 = arith.constant 0 : i32
    %c0_i32_1 = arith.constant 0 : i32
    %c0_i32_2 = arith.constant 0 : i32
    return %c0_i32, %c0_i32_0, %c0_i32_1 : i32, i32, i32
  }
  func.func @transform_5(%arg0: i32) -> (i32, i32) {
    %c0_i32 = arith.constant 0 : i32
    %c0_i32_0 = arith.constant 0 : i32
    %c0_i32_1 = arith.constant 0 : i32
    return %c0_i32, %c0_i32_0 : i32, i32
  }
  func.func @transform_6(%arg0: i32) -> (i32, i32) {
    %c0_i32 = arith.constant 0 : i32
    %c0_i32_0 = arith.constant 0 : i32
    %c0_i32_1 = arith.constant 0 : i32
    return %c0_i32, %c0_i32_0 : i32, i32
  }
  func.func @transform_7(%arg0: i32) -> (i32, i32) {
    %c0_i32 = arith.constant 0 : i32
    %c0_i32_0 = arith.constant 0 : i32
    return %arg0, %c0_i32 : i32, i32
  }
}

</mosaic_0001>

<llo_original>
// kernel: mlp_forward.1
$region0: #{mlp_forward.1}
  #allocation0 [shape = 'u32[]', space=smem, size = 0x4, offset = 0x4, fixed_abs, tag = 'smem constant byte address 0x4 - core index']
  #allocation1 [shape = 'u32[72,128]{1,0:T(1,128)}', space=vmem, size = 0x9000, scoped, tag = 'internal scratch']
  %s0 = inlined_call_operand.vmem [shape: f32[37,11], index: 0, kind: input, shape index: {}]
  %s1 = inlined_call_operand.vmem [shape: bf16[11,128], index: 1, kind: input, shape index: {}]
  %s2 = inlined_call_operand.vmem [shape: f32[1,128], index: 2, kind: input, shape index: {}]
  %s3 = inlined_call_operand.hbm [shape: bf16[5,128,128], index: 3, kind: input, shape index: {}]
  %s4 = inlined_call_operand.vmem [shape: f32[5,1,128], index: 4, kind: input, shape index: {}]
  %s5 = inlined_call_operand.vmem [shape: bf16[128,3], index: 5, kind: input, shape index: {}]
  %s6 = inlined_call_operand.vmem [shape: f32[1,3], index: 6, kind: input, shape index: {}]
  %s7 = inlined_call_operand.vmem [shape: f32[37,3], index: 7, kind: output, shape index: {}]
  %s8 = sld [smem:[#allocation0]]
  $region113: #{mlp_forward.1} parent=0
    _
  %s10 = ssub.s32 1, %s8
  %s11 = scalar_select 0, %s10, %s8
  $region1: #{mlp_forward.1} parent=0
    #allocation2 [shape = 'u8[163840]{0}', space=vmem, size = 0x28000, scoped, tag = 'input window, operand 3, single buffered']
    #allocation3 [shape = 's32[2]{0}', space=sflag, size = 0x8, scoped, tag = 'scoped memory for mlp_forward.1']
    #allocation4 [shape = 'u8[16384]{0}', space=vmem, size = 0x4000, scoped, tag = 'output window, operand 0']
    %12 = vsyncpa [#allocation3], 0
    loop: start=0, step=1, limit=5
    $region2: #{mlp_forward.1} parent=1 // loop_pre_header
      _
    $region3: #{mlp_forward.1} parent=1 // loop_header
      %s14 = sphi 0, %s18
      %p15 = scmp.ge.s32.totalorder %s14, 5
      %s24 = sphi 0, %s26
      %s27 = sphi 0, %s24
      %s28 = sphi 0, %s27
      %s44 = sphi 0, %s28
      %s48 = sphi 0, %s48
      %s50 = sphi 0, %s48
      %s51 = sphi 0, %s50
      %s65 = sphi 0, %s51
      %s69 = sphi 0, %s69
      %s71 = sphi 0, %s69
      %s72 = sphi 0, %s71
      %s86 = sphi 0, %s72
      %s90 = sphi 0, %s90
      %s92 = sphi 0, %s90
      %s93 = sphi 0, %s92
      %s107 = sphi 0, %s93
      %s111 = sphi 0, %s111
      %s113 = sphi 0, %s111
      %s114 = sphi 0, %s113
      %s128 = sphi 0, %s114
      %s132 = sphi 0, %s132
      %s134 = sphi 0, %s132
      %s135 = sphi 0, %s134
      %s149 = sphi 0, %s135
      %s153 = sphi 0, %s153
      %s155 = sphi 0, %s153
      %s156 = sphi 0, %s155
      %s170 = sphi 0, %s156
      %s176 = sphi 0, %s178
      %s179 = sphi 0, %s176
      %s180 = sphi 0, %s179
      %s196 = sphi 0, %s180
    $region4: #{mlp_forward.1} parent=1 // loop_header_branch
      %17 = sbr.rel (%p15) target = $region8
    $region5: #{mlp_forward.1} parent=1 // loop_body
      %s19 = ssub.s32 %s14, 1
      %s20 = ssub.s32 %s14, 2
      %s21 = sadd.s32 %s14, 1
      %s22 = ssub.s32 %s14, %s21
      %p23 = scmp.eq.s32.totalorder %s22, 0
      %s25 = sadd.s32 %s24, 1
      %s26 = scalar_select %p23, %s24, %s25
      %p29 = pneg %p23
      %p30 = scmp.eq.s32.totalorder %s14, 2
      %p31 = por %p29, %p30
      %p32 = scmp.ne.s32.totalorder %s24, %s27
      %p33 = scmp.eq.s32.totalorder %s14, 0
      %p34 = por %p32, %p33
      %p35 = scmp.ne.s32.totalorder %s24, %s27
      %p36 = scmp.eq.s32.totalorder %s19, 2
      %p37 = por %p35, %p36
      %p38 = scmp.ne.s32.totalorder %s27, %s28
      %p39 = scmp.eq.s32.totalorder %s19, 0
      %p40 = por %p38, %p39
      %p41 = scmp.ne.s32.totalorder %s27, %s28
      %p42 = scmp.eq.s32.totalorder %s20, 2
      %p43 = por %p41, %p42
      %p45 = scmp.ne.s32.totalorder %s28, %s44
      %p46 = scmp.eq.s32.totalorder %s20, 0
      %p47 = por %p45, %p46
      %s49 = sadd.s32 %s48, 1
      %p52 = scmp.eq.s32.totalorder %s14, 2
      %p53 = scmp.ne.s32.totalorder %s48, %s50
      %p54 = scmp.eq.s32.totalorder %s14, 0
      %p55 = por %p53, %p54
      %p56 = scmp.ne.s32.totalorder %s48, %s50
      %p57 = scmp.eq.s32.totalorder %s19, 2
      %p58 = por %p56, %p57
      %p59 = scmp.ne.s32.totalorder %s50, %s51
      %p60 = scmp.eq.s32.totalorder %s19, 0
      %p61 = por %p59, %p60
      %p62 = scmp.ne.s32.totalorder %s50, %s51
      %p63 = scmp.eq.s32.totalorder %s20, 2
      %p64 = por %p62, %p63
      %p66 = scmp.ne.s32.totalorder %s51, %s65
      %p67 = scmp.eq.s32.totalorder %s20, 0
      %p68 = por %p66, %p67
      %s70 = sadd.s32 %s69, 1
      %p73 = scmp.eq.s32.totalorder %s14, 2
      %p74 = scmp.ne.s32.totalorder %s69, %s71
      %p75 = scmp.eq.s32.totalorder %s14, 0
      %p76 = por %p74, %p75
      %p77 = scmp.ne.s32.totalorder %s69, %s71
      %p78 = scmp.eq.s32.totalorder %s19, 2
      %p79 = por %p77, %p78
      %p80 = scmp.ne.s32.totalorder %s71, %s72
      %p81 = scmp.eq.s32.totalorder %s19, 0
      %p82 = por %p80, %p81
      %p83 = scmp.ne.s32.totalorder %s71, %s72
      %p84 = scmp.eq.s32.totalorder %s20, 2
      %p85 = por %p83, %p84
      %p87 = scmp.ne.s32.totalorder %s72, %s86
      %p88 = scmp.eq.s32.totalorder %s20, 0
      %p89 = por %p87, %p88
      %s91 = sadd.s32 %s90, 1
      %p94 = scmp.eq.s32.totalorder %s14, 2
      %p95 = scmp.ne.s32.totalorder %s90, %s92
      %p96 = scmp.eq.s32.totalorder %s14, 0
      %p97 = por %p95, %p96
      %p98 = scmp.ne.s32.totalorder %s90, %s92
      %p99 = scmp.eq.s32.totalorder %s19, 2
      %p100 = por %p98, %p99
      %p101 = scmp.ne.s32.totalorder %s92, %s93
      %p102 = scmp.eq.s32.totalorder %s19, 0
      %p103 = por %p101, %p102
      %p104 = scmp.ne.s32.totalorder %s92, %s93
      %p105 = scmp.eq.s32.totalorder %s20, 2
      %p106 = por %p104, %p105
      %p108 = scmp.ne.s32.totalorder %s93, %s107
      %p109 = scmp.eq.s32.totalorder %s20, 0
      %p110 = por %p108, %p109
      %s112 = sadd.s32 %s111, 1
      %p115 = scmp.eq.s32.totalorder %s14, 2
      %p116 = scmp.ne.s32.totalorder %s111, %s113
      %p117 = scmp.eq.s32.totalorder %s14, 0
      %p118 = por %p116, %p117
      %p119 = scmp.ne.s32.totalorder %s111, %s113
      %p120 = scmp.eq.s32.totalorder %s19, 2
      %p121 = por %p119, %p120
      %p122 = scmp.ne.s32.totalorder %s113, %s114
      %p123 = scmp.eq.s32.totalorder %s19, 0
      %p124 = por %p122, %p123
      %p125 = scmp.ne.s32.totalorder %s113, %s114
      %p126 = scmp.eq.s32.totalorder %s20, 2
      %p127 = por %p125, %p126
      %p129 = scmp.ne.s32.totalorder %s114, %s128
      %p130 = scmp.eq.s32.totalorder %s20, 0
      %p131 = por %p129, %p130
      %s133 = sadd.s32 %s132, 1
      %p136 = scmp.eq.s32.totalorder %s14, 2
      %p137 = scmp.ne.s32.totalorder %s132, %s134
      %p138 = scmp.eq.s32.totalorder %s14, 0
      %p139 = por %p137, %p138
      %p140 = scmp.ne.s32.totalorder %s132, %s134
      %p141 = scmp.eq.s32.totalorder %s19, 2
      %p142 = por %p140, %p141
      %p143 = scmp.ne.s32.totalorder %s134, %s135
      %p144 = scmp.eq.s32.totalorder %s19, 0
      %p145 = por %p143, %p144
      %p146 = scmp.ne.s32.totalorder %s134, %s135
      %p147 = scmp.eq.s32.totalorder %s20, 2
      %p148 = por %p146, %p147
      %p150 = scmp.ne.s32.totalorder %s135, %s149
      %p151 = scmp.eq.s32.totalorder %s20, 0
      %p152 = por %p150, %p151
      %s154 = sadd.s32 %s153, 1
      %p157 = scmp.eq.s32.totalorder %s14, 2
      %p158 = scmp.ne.s32.totalorder %s153, %s155
      %p159 = scmp.eq.s32.totalorder %s14, 0
      %p160 = por %p158, %p159
      %p161 = scmp.ne.s32.totalorder %s153, %s155
      %p162 = scmp.eq.s32.totalorder %s19, 2
      %p163 = por %p161, %p162
      %p164 = scmp.ne.s32.totalorder %s155, %s156
      %p165 = scmp.eq.s32.totalorder %s19, 0
      %p166 = por %p164, %p165
      %p167 = scmp.ne.s32.totalorder %s155, %s156
      %p168 = scmp.eq.s32.totalorder %s20, 2
      %p169 = por %p167, %p168
      %p171 = scmp.ne.s32.totalorder %s156, %s170
      %p172 = scmp.eq.s32.totalorder %s20, 0
      %p173 = por %p171, %p172
      %s174 = ssub.s32 %s14, %s21
      %p175 = scmp.eq.s32.totalorder %s174, 0
      %s177 = sadd.s32 %s176, 1
      %s178 = scalar_select %p175, %s176, %s177
      %p181 = pneg %p175
      %p182 = scmp.eq.s32.totalorder %s14, 2
      %p183 = por %p181, %p182
      %p184 = scmp.ne.s32.totalorder %s176, %s179
      %p185 = scmp.eq.s32.totalorder %s14, 0
      %p186 = por %p184, %p185
      %p187 = scmp.ne.s32.totalorder %s176, %s179
      %p188 = scmp.eq.s32.totalorder %s19, 2
      %p189 = por %p187, %p188
      %p190 = scmp.ne.s32.totalorder %s179, %s180
      %p191 = scmp.eq.s32.totalorder %s19, 0
      %p192 = por %p190, %p191
      %p193 = scmp.ne.s32.totalorder %s179, %s180
      %p194 = scmp.eq.s32.totalorder %s20, 2
      %p195 = por %p193, %p194
      %p197 = scmp.ne.s32.totalorder %s180, %s196
      %p198 = scmp.eq.s32.totalorder %s20, 0
      %p199 = por %p197, %p198
      %p200 = scmp.le.s32.totalorder 1, %s14
      %p201 = scmp.lt.s32.totalorder %s14, 4
      %p202 = pnand %p200, %p201
      %p203 = pneg %p202
      // Predicated region
      $region9: #{mlp_forward.1} parent=5 // pred_check
        _
      $region10: #{mlp_forward.1} parent=5 // pred_check_branch
        %205 = sbr.rel (%p202) target = $region12
      $region11: #{mlp_forward.1} parent=5 // pred_region
        %s206 = ssub.s32 %s14, 1
        // Predicated region
        $region13: #{mlp_forward.1} parent=11 // pred_check
          %p207 = pneg %p61
        $region14: #{mlp_forward.1} parent=11 // pred_check_branch
          %209 = sbr.rel (%p207) target = $region16
        $region15: #{mlp_forward.1} parent=11 // pred_region
          _
        $region16: #{mlp_forward.1} parent=11 // pred_fallthru
          _
        // Predicated region
        $region17: #{mlp_forward.1} parent=11 // pred_check
          %p210 = pneg %p82
        $region18: #{mlp_forward.1} parent=11 // pred_check_branch
          %212 = sbr.rel (%p210) target = $region20
        $region19: #{mlp_forward.1} parent=11 // pred_region
          _
        $region20: #{mlp_forward.1} parent=11 // pred_fallthru
          _
        // Predicated region
        $region21: #{mlp_forward.1} parent=11 // pred_check
          %p213 = pneg %p103
        $region22: #{mlp_forward.1} parent=11 // pred_check_branch
          %215 = sbr.rel (%p213) target = $region24
        $region23: #{mlp_forward.1} parent=11 // pred_region
          %217 = vsyncadd [#allocation3], 0
          %s218 = sshll.u32 %s3, 4
          %s219 = int_to_ptr.hbm [resolvable:$true] %s218
          %s220 = sshll.u32 [#allocation2], 4
          %s221 = int_to_ptr.vmem [resolvable:$true] %s220
          %226 = dma.hbm_to_vmem [thread:$0]  %s219, 5120, %s221, [#allocation3], 64, 64, 4
        $region24: #{mlp_forward.1} parent=11 // pred_fallthru
          _
        // Predicated region
        $region25: #{mlp_forward.1} parent=11 // pred_check
          %p227 = pneg %p124
        $region26: #{mlp_forward.1} parent=11 // pred_check_branch
          %229 = sbr.rel (%p227) target = $region28
        $region27: #{mlp_forward.1} parent=11 // pred_region
          _
        $region28: #{mlp_forward.1} parent=11 // pred_fallthru
          _
        // Predicated region
        $region29: #{mlp_forward.1} parent=11 // pred_check
          %p230 = pneg %p145
        $region30: #{mlp_forward.1} parent=11 // pred_check_branch
          %232 = sbr.rel (%p230) target = $region32
        $region31: #{mlp_forward.1} parent=11 // pred_region
          _
        $region32: #{mlp_forward.1} parent=11 // pred_fallthru
          _
        // Predicated region
        $region33: #{mlp_forward.1} parent=11 // pred_check
          %p233 = pneg %p166
        $region34: #{mlp_forward.1} parent=11 // pred_check_branch
          %235 = sbr.rel (%p233) target = $region36
        $region35: #{mlp_forward.1} parent=11 // pred_region
          _
        $region36: #{mlp_forward.1} parent=11 // pred_fallthru
          _
      $region12: #{mlp_forward.1} parent=5 // pred_fallthru
        _
      %p236 = scmp.lt.s32.totalorder %s14, 3
      // Predicated region
      $region37: #{mlp_forward.1} parent=5 // pred_check
        %p237 = pneg %p236
      $region38: #{mlp_forward.1} parent=5 // pred_check_branch
        %239 = sbr.rel (%p237) target = $region40
      $region39: #{mlp_forward.1} parent=5 // pred_region
        // Predicated region
        $region41: #{mlp_forward.1} parent=39 // pred_check
          %p240 = pneg %p34
        $region42: #{mlp_forward.1} parent=39 // pred_check_branch
          %242 = sbr.rel (%p240) target = $region44
        $region43: #{mlp_forward.1} parent=39 // pred_region
          %s243 = smul.u32 2, %s14
          %s244 = ssub.s32 5, %s243
          %p245 = scmp.lt.s32.totalorder %s244, 2
          %s246 = scalar_select %p245, %s244, 2
          %s247 = smul.u32 8, %s246
          %p248 = scmp.lt.s32.totalorder %s243, 4
          %s249 = scalar_select %p248, %s243, 4
          %s250 = smul.addr %s249, 8
          %s251 = scalar_lea.vmem %s0, %s250
          %s252 = smul.u32 2, %s14
          %s253 = ssub.s32 5, %s252
          %p254 = scmp.lt.s32.totalorder %s253, 2
          %s255 = scalar_select %p254, %s253, 2
          %s256 = smul.u32 8, %s255
        $region44: #{mlp_forward.1} parent=39 // pred_fallthru
          _
      $region40: #{mlp_forward.1} parent=5 // pred_fallthru
        _
      %p257 = scmp.le.s32.totalorder 1, %s14
      %p258 = scmp.lt.s32.totalorder %s14, 4
      %p259 = pnand %p257, %p258
      %p260 = pneg %p259
      // Predicated region
      $region45: #{mlp_forward.1} parent=5 // pred_check
        _
      $region46: #{mlp_forward.1} parent=5 // pred_check_branch
        %262 = sbr.rel (%p259) target = $region48
      $region47: #{mlp_forward.1} parent=5 // pred_region
        %s263 = ssub.s32 %s14, 1
        // Predicated region
        $region49: #{mlp_forward.1} parent=47 // pred_check
          %p264 = pneg %p103
        $region50: #{mlp_forward.1} parent=47 // pred_check_branch
          %266 = sbr.rel (%p264) target = $region52
        $region51: #{mlp_forward.1} parent=47 // pred_region
          %268 = dma.done [#allocation3], 5120
        $region52: #{mlp_forward.1} parent=47 // pred_fallthru
          _
        %s269 = smul.u32 2, %s19
        %s270 = ssub.s32 5, %s269
        %p271 = scmp.lt.s32.totalorder %s270, 2
        %s272 = scalar_select %p271, %s270, 2
        %s273 = smul.u32 8, %s272
        %p274 = scmp.lt.s32.totalorder %s269, 4
        %s275 = scalar_select %p274, %s269, 4
        %s276 = smul.addr %s275, 8
        %s277 = scalar_lea.vmem %s0, %s276
        %p278 = pneg %p40
        %p279 = pneg %p37
        %p280 = pneg %p61
        %p281 = pneg %p58
        %p282 = pneg %p82
        %p283 = pneg %p79
        %p284 = pneg %p103
        %p285 = pneg %p100
        %p286 = pneg %p124
        %p287 = pneg %p121
        %p288 = pneg %p145
        %p289 = pneg %p142
        %p290 = pneg %p166
        %p291 = pneg %p163
        %p292 = pneg %p192
        %p293 = pneg %p189
        %s294 = sand.u32 %s179, 1
        %s295 = sand.u32 %s179, 1
        %s296 = smul.addr %s295, 16
        %s297 = scalar_lea.vmem [#allocation4], %s296
        %s298 = smul.u32 2, %s19
        %s299 = ssub.s32 5, %s298
        %p300 = scmp.lt.s32.totalorder %s299, 2
        %s301 = scalar_select %p300, %s299, 2
        %s302 = smul.u32 8, %s301
        %p303 = scmp.lt.s32.totalorder %s298, 4
        %s304 = scalar_select %p303, %s298, 4
        %s305 = smul.addr %s304, 8
        %s306 = scalar_lea.vmem %s0, %s305
        %s307 = smul.u32 2, %s19
        %s308 = ssub.s32 5, %s307
        %p309 = scmp.lt.s32.totalorder %s308, 2
        %s310 = scalar_select %p309, %s308, 2
        %s311 = smul.u32 8, %s310
        %s312 = smul.u32 2, %s19
        %s313 = ssub.s32 5, %s312
        %p314 = scmp.lt.s32.totalorder %s313, 2
        %s315 = scalar_select %p314, %s313, 2
        %s316 = smul.u32 8, %s315
        %v318 = vld [vmem:[%s1] sm:$0xf]
        %v319 = vld [vmem:[%s1 + $0x4] sm:$0x3]
        %v320 = vld [vmem:[%s2] sm:$0x1]
        %v321 = vld [vmem:[%s5] sm:$0xf]
        %v322 = vld [vmem:[%s5 + $0x4] sm:$0xf]
        %v323 = vld [vmem:[%s5 + $0x8] sm:$0xf]
        %v324 = vld [vmem:[%s5 + $0xc] sm:$0xf]
        %v325 = vld [vmem:[%s5 + $0x10] sm:$0xf]
        %v326 = vld [vmem:[%s5 + $0x14] sm:$0xf]
        %v327 = vld [vmem:[%s5 + $0x18] sm:$0xf]
        %v328 = vld [vmem:[%s5 + $0x1c] sm:$0xf]
        %v329 = vld [vmem:[%s5 + $0x20] sm:$0xf]
        %v330 = vld [vmem:[%s5 + $0x24] sm:$0xf]
        %v331 = vld [vmem:[%s5 + $0x28] sm:$0xf]
        %v332 = vld [vmem:[%s5 + $0x2c] sm:$0xf]
        %v333 = vld [vmem:[%s5 + $0x30] sm:$0xf]
        %v334 = vld [vmem:[%s5 + $0x34] sm:$0xf]
        %v335 = vld [vmem:[%s5 + $0x38] sm:$0xf]
        %v336 = vld [vmem:[%s5 + $0x3c] sm:$0xf]
        %v337 = vld [vmem:[%s6] sm:$0x1]
        %v338 = vld [vmem:[%s306] sm:$0xff]
        %v339 = vpack.c.bf16 %v338, %v338
        %v341 = vperm.slane %v320, 0
        %v345 = vunpack.c.l.b16 %v318
        %v346 = vunpack.c.l.b16 %v319
        %v347 = vpack.c.b16 %v346, %v345
        %vm348 = vcmask 89088
        %v350 = vsel %vm348, %v339, 0
        %vm352 = vcmask 1044480
        %vm353 = vcmask 1045504
        %v354 = vsel %vm352, 4294967295, 65535
        %v355 = vsel %vm353, %v354, 0
        %v357 = vand.u32 %v347, %v355
        %359 = vmatpush.bf16.msra.mxu0 0
        %360 = vmatpush.bf16.msra.mxu0 0
        %361 = vmatpush.bf16.msra.mxu0 0
        %362 = vmatpush.bf16.msra.mxu0 0
        %363 = vmatpush.bf16.msra.mxu0 0
        %364 = vmatpush.bf16.msra.mxu0 0
        %365 = vmatpush.bf16.msra.mxu0 0
        %366 = vmatpush.bf16.msra.mxu0 %v357
        %367 = vmatmul.bf16.gmra.mxu0 %v350
        %v368 = vpop.f32.mrf.mxu0
        %v369 = vadd.f32 %v341, %v368
        %v370 = vpop.f32.mrf.mxu0
        %371 = vdwg.mxu0
        %v372 = vmax.f32 %v369, 0.0
        %v373 = vld [vmem:[%s306 + $0x8] sm:$0xff]
        %v374 = vpack.c.bf16 %v373, %v373
        %v376 = vsel %vm348, %v374, 0
        %378 = vmatpush.bf16.msra.mxu0 0
        %379 = vmatpush.bf16.msra.mxu0 0
        %380 = vmatpush.bf16.msra.mxu0 0
        %381 = vmatpush.bf16.msra.mxu0 0
        %382 = vmatpush.bf16.msra.mxu0 0
        %383 = vmatpush.bf16.msra.mxu0 0
        %384 = vmatpush.bf16.msra.mxu0 0
        %385 = vmatpush.bf16.msra.mxu0 %v357
        %386 = vmatmul.bf16.gmra.mxu0 %v376
        %v387 = vpop.f32.mrf.mxu0
        %v388 = vadd.f32 %v341, %v387
        %v389 = vpop.f32.mrf.mxu0
        %390 = vdwg.mxu0
        %v391 = vmax.f32 %v388, 0.0
        %v392 = vld [vmem:[#allocation2] sm:$0xf]
        %v393 = vld [vmem:[#allocation2 + $0x4] sm:$0xf]
        %v394 = vld [vmem:[#allocation2 + $0x8] sm:$0xf]
        %v395 = vld [vmem:[#allocation2 + $0xc] sm:$0xf]
        %v396 = vld [vmem:[#allocation2 + $0x10] sm:$0xf]
        %v397 = vld [vmem:[#allocation2 + $0x14] sm:$0xf]
        %v398 = vld [vmem:[#allocation2 + $0x18] sm:$0xf]
        %v399 = vld [vmem:[#allocation2 + $0x1c] sm:$0xf]
        %v400 = vld [vmem:[#allocation2 + $0x20] sm:$0xf]
        %v401 = vld [vmem:[#allocation2 + $0x24] sm:$0xf]
        %v402 = vld [vmem:[#allocation2 + $0x28] sm:$0xf]
        %v403 = vld [vmem:[#allocation2 + $0x2c] sm:$0xf]
        %v404 = vld [vmem:[#allocation2 + $0x30] sm:$0xf]
        %v405 = vld [vmem:[#allocation2 + $0x34] sm:$0xf]
        %v406 = vld [vmem:[#allocation2 + $0x38] sm:$0xf]
        %v407 = vld [vmem:[#allocation2 + $0x3c] sm:$0xf]
        %v408 = vld [vmem:[%s4] sm:$0x1]
        %v409 = vpack.c.bf16 %v372, %v372
        %v411 = vperm.slane %v408, 0
        %v429 = vunpack.c.l.b16 %v392
        %v430 = vunpack.c.l.b16 %v393
        %v431 = vunpack.c.l.b16 %v394
        %v432 = vunpack.c.l.b16 %v395
        %v433 = vunpack.c.l.b16 %v396
        %v434 = vunpack.c.l.b16 %v397
        %v435 = vunpack.c.l.b16 %v398
        %v436 = vunpack.c.l.b16 %v399
        %v437 = vunpack.c.l.b16 %v400
        %v438 = vunpack.c.l.b16 %v401
        %v439 = vunpack.c.l.b16 %v402
        %v440 = vunpack.c.l.b16 %v403
        %v441 = vunpack.c.l.b16 %v404
        %v442 = vunpack.c.l.b16 %v405
        %v443 = vunpack.c.l.b16 %v406
        %v444 = vunpack.c.l.b16 %v407
        %v445 = vpack.c.b16 %v430, %v429
        %v446 = vpack.c.b16 %v432, %v431
        %v447 = vpack.c.b16 %v434, %v433
        %v448 = vpack.c.b16 %v436, %v435
        %v449 = vpack.c.b16 %v438, %v437
        %v450 = vpack.c.b16 %v440, %v439
        %v451 = vpack.c.b16 %v442, %v441
        %v452 = vpack.c.b16 %v444, %v443
        %461 = vmatpush.bf16.msra.mxu0 %v452
        %462 = vmatpush.bf16.msra.mxu0 %v451
        %463 = vmatpush.bf16.msra.mxu0 %v450
        %464 = vmatpush.bf16.msra.mxu0 %v449
        %465 = vmatpush.bf16.msra.mxu0 %v448
        %466 = vmatpush.bf16.msra.mxu0 %v447
        %467 = vmatpush.bf16.msra.mxu0 %v446
        %468 = vmatpush.bf16.msra.mxu0 %v445
        %469 = vmatmul.bf16.gmra.mxu0 %v409
        %v470 = vpop.f32.mrf.mxu0
        %v471 = vadd.f32 %v411, %v470
        %v472 = vpop.f32.mrf.mxu0
        %473 = vdwg.mxu0
        %v474 = vmax.f32 %v471, 0.0
        %v475 = vpack.c.bf16 %v391, %v391
        %476 = vmatpush.bf16.msra.mxu0 %v452
        %477 = vmatpush.bf16.msra.mxu0 %v451
        %478 = vmatpush.bf16.msra.mxu0 %v450
        %479 = vmatpush.bf16.msra.mxu0 %v449
        %480 = vmatpush.bf16.msra.mxu0 %v448
        %481 = vmatpush.bf16.msra.mxu0 %v447
        %482 = vmatpush.bf16.msra.mxu0 %v446
        %483 = vmatpush.bf16.msra.mxu0 %v445
        %484 = vmatmul.bf16.gmra.mxu0 %v475
        %v485 = vpop.f32.mrf.mxu0
        %v486 = vadd.f32 %v411, %v485
        %v487 = vpop.f32.mrf.mxu0
        %488 = vdwg.mxu0
        %v489 = vmax.f32 %v486, 0.0
        %s490 = scalar_lea.vmem [#allocation2], 64
        %v491 = vld [vmem:[%s490] sm:$0xf]
        %v492 = vld [vmem:[%s490 + $0x4] sm:$0xf]
        %v493 = vld [vmem:[%s490 + $0x8] sm:$0xf]
        %v494 = vld [vmem:[%s490 + $0xc] sm:$0xf]
        %v495 = vld [vmem:[%s490 + $0x10] sm:$0xf]
        %v496 = vld [vmem:[%s490 + $0x14] sm:$0xf]
        %v497 = vld [vmem:[%s490 + $0x18] sm:$0xf]
        %v498 = vld [vmem:[%s490 + $0x1c] sm:$0xf]
        %v499 = vld [vmem:[%s490 + $0x20] sm:$0xf]
        %v500 = vld [vmem:[%s490 + $0x24] sm:$0xf]
        %v501 = vld [vmem:[%s490 + $0x28] sm:$0xf]
        %v502 = vld [vmem:[%s490 + $0x2c] sm:$0xf]
        %v503 = vld [vmem:[%s490 + $0x30] sm:$0xf]
        %v504 = vld [vmem:[%s490 + $0x34] sm:$0xf]
        %v505 = vld [vmem:[%s490 + $0x38] sm:$0xf]
        %v506 = vld [vmem:[%s490 + $0x3c] sm:$0xf]
        %s507 = scalar_lea.vmem %s4, 1
        %v508 = vld [vmem:[%s507] sm:$0x1]
        %v509 = vpack.c.bf16 %v474, %v474
        %v511 = vperm.slane %v508, 0
        %v529 = vunpack.c.l.b16 %v491
        %v530 = vunpack.c.l.b16 %v492
        %v531 = vunpack.c.l.b16 %v493
        %v532 = vunpack.c.l.b16 %v494
        %v533 = vunpack.c.l.b16 %v495
        %v534 = vunpack.c.l.b16 %v496
        %v535 = vunpack.c.l.b16 %v497
        %v536 = vunpack.c.l.b16 %v498
        %v537 = vunpack.c.l.b16 %v499
        %v538 = vunpack.c.l.b16 %v500
        %v539 = vunpack.c.l.b16 %v501
        %v540 = vunpack.c.l.b16 %v502
        %v541 = vunpack.c.l.b16 %v503
        %v542 = vunpack.c.l.b16 %v504
        %v543 = vunpack.c.l.b16 %v505
        %v544 = vunpack.c.l.b16 %v506
        %v545 = vpack.c.b16 %v530, %v529
        %v546 = vpack.c.b16 %v532, %v531
        %v547 = vpack.c.b16 %v534, %v533
        %v548 = vpack.c.b16 %v536, %v535
        %v549 = vpack.c.b16 %v538, %v537
        %v550 = vpack.c.b16 %v540, %v539
        %v551 = vpack.c.b16 %v542, %v541
        %v552 = vpack.c.b16 %v544, %v543
        %561 = vmatpush.bf16.msra.mxu0 %v552
        %562 = vmatpush.bf16.msra.mxu0 %v551
        %563 = vmatpush.bf16.msra.mxu0 %v550
        %564 = vmatpush.bf16.msra.mxu0 %v549
        %565 = vmatpush.bf16.msra.mxu0 %v548
        %566 = vmatpush.bf16.msra.mxu0 %v547
        %567 = vmatpush.bf16.msra.mxu0 %v546
        %568 = vmatpush.bf16.msra.mxu0 %v545
        %569 = vmatmul.bf16.gmra.mxu0 %v509
        %v570 = vpop.f32.mrf.mxu0
        %v571 = vadd.f32 %v511, %v570
        %v572 = vpop.f32.mrf.mxu0
        %573 = vdwg.mxu0
        %v574 = vmax.f32 %v571, 0.0
        %v575 = vpack.c.bf16 %v489, %v489
        %576 = vmatpush.bf16.msra.mxu0 %v552
        %577 = vmatpush.bf16.msra.mxu0 %v551
        %578 = vmatpush.bf16.msra.mxu0 %v550
        %579 = vmatpush.bf16.msra.mxu0 %v549
        %580 = vmatpush.bf16.msra.mxu0 %v548
        %581 = vmatpush.bf16.msra.mxu0 %v547
        %582 = vmatpush.bf16.msra.mxu0 %v546
        %583 = vmatpush.bf16.msra.mxu0 %v545
        %584 = vmatmul.bf16.gmra.mxu0 %v575
        %v585 = vpop.f32.mrf.mxu0
        %v586 = vadd.f32 %v511, %v585
        %v587 = vpop.f32.mrf.mxu0
        %588 = vdwg.mxu0
        %v589 = vmax.f32 %v586, 0.0
        %s590 = scalar_lea.vmem [#allocation2], 128
        %v591 = vld [vmem:[%s590] sm:$0xf]
        %v592 = vld [vmem:[%s590 + $0x4] sm:$0xf]
        %v593 = vld [vmem:[%s590 + $0x8] sm:$0xf]
        %v594 = vld [vmem:[%s590 + $0xc] sm:$0xf]
        %v595 = vld [vmem:[%s590 + $0x10] sm:$0xf]
        %v596 = vld [vmem:[%s590 + $0x14] sm:$0xf]
        %v597 = vld [vmem:[%s590 + $0x18] sm:$0xf]
        %v598 = vld [vmem:[%s590 + $0x1c] sm:$0xf]
        %v599 = vld [vmem:[%s590 + $0x20] sm:$0xf]
        %v600 = vld [vmem:[%s590 + $0x24] sm:$0xf]
        %v601 = vld [vmem:[%s590 + $0x28] sm:$0xf]
        %v602 = vld [vmem:[%s590 + $0x2c] sm:$0xf]
        %v603 = vld [vmem:[%s590 + $0x30] sm:$0xf]
        %v604 = vld [vmem:[%s590 + $0x34] sm:$0xf]
        %v605 = vld [vmem:[%s590 + $0x38] sm:$0xf]
        %v606 = vld [vmem:[%s590 + $0x3c] sm:$0xf]
        %s607 = scalar_lea.vmem %s4, 2
        %v608 = vld [vmem:[%s607] sm:$0x1]
        %v609 = vpack.c.bf16 %v574, %v574
        %v611 = vperm.slane %v608, 0
        %v629 = vunpack.c.l.b16 %v591
        %v630 = vunpack.c.l.b16 %v592
        %v631 = vunpack.c.l.b16 %v593
        %v632 = vunpack.c.l.b16 %v594
        %v633 = vunpack.c.l.b16 %v595
        %v634 = vunpack.c.l.b16 %v596
        %v635 = vunpack.c.l.b16 %v597
        %v636 = vunpack.c.l.b16 %v598
        %v637 = vunpack.c.l.b16 %v599
        %v638 = vunpack.c.l.b16 %v600
        %v639 = vunpack.c.l.b16 %v601
        %v640 = vunpack.c.l.b16 %v602
        %v641 = vunpack.c.l.b16 %v603
        %v642 = vunpack.c.l.b16 %v604
        %v643 = vunpack.c.l.b16 %v605
        %v644 = vunpack.c.l.b16 %v606
        %v645 = vpack.c.b16 %v630, %v629
        %v646 = vpack.c.b16 %v632, %v631
        %v647 = vpack.c.b16 %v634, %v633
        %v648 = vpack.c.b16 %v636, %v635
        %v649 = vpack.c.b16 %v638, %v637
        %v650 = vpack.c.b16 %v640, %v639
        %v651 = vpack.c.b16 %v642, %v641
        %v652 = vpack.c.b16 %v644, %v643
        %661 = vmatpush.bf16.msra.mxu0 %v652
        %662 = vmatpush.bf16.msra.mxu0 %v651
        %663 = vmatpush.bf16.msra.mxu0 %v650
        %664 = vmatpush.bf16.msra.mxu0 %v649
        %665 = vmatpush.bf16.msra.mxu0 %v648
        %666 = vmatpush.bf16.msra.mxu0 %v647
        %667 = vmatpush.bf16.msra.mxu0 %v646
        %668 = vmatpush.bf16.msra.mxu0 %v645
        %669 = vmatmul.bf16.gmra.mxu0 %v609
        %v670 = vpop.f32.mrf.mxu0
        %v671 = vadd.f32 %v611, %v670
        %v672 = vpop.f32.mrf.mxu0
        %673 = vdwg.mxu0
        %v674 = vmax.f32 %v671, 0.0
        %v675 = vpack.c.bf16 %v589, %v589
        %676 = vmatpush.bf16.msra.mxu0 %v652
        %677 = vmatpush.bf16.msra.mxu0 %v651
        %678 = vmatpush.bf16.msra.mxu0 %v650
        %679 = vmatpush.bf16.msra.mxu0 %v649
        %680 = vmatpush.bf16.msra.mxu0 %v648
        %681 = vmatpush.bf16.msra.mxu0 %v647
        %682 = vmatpush.bf16.msra.mxu0 %v646
        %683 = vmatpush.bf16.msra.mxu0 %v645
        %684 = vmatmul.bf16.gmra.mxu0 %v675
        %v685 = vpop.f32.mrf.mxu0
        %v686 = vadd.f32 %v611, %v685
        %v687 = vpop.f32.mrf.mxu0
        %688 = vdwg.mxu0
        %v689 = vmax.f32 %v686, 0.0
        %s690 = scalar_lea.vmem [#allocation2], 192
        %v691 = vld [vmem:[%s690] sm:$0xf]
        %v692 = vld [vmem:[%s690 + $0x4] sm:$0xf]
        %v693 = vld [vmem:[%s690 + $0x8] sm:$0xf]
        %v694 = vld [vmem:[%s690 + $0xc] sm:$0xf]
        %v695 = vld [vmem:[%s690 + $0x10] sm:$0xf]
        %v696 = vld [vmem:[%s690 + $0x14] sm:$0xf]
        %v697 = vld [vmem:[%s690 + $0x18] sm:$0xf]
        %v698 = vld [vmem:[%s690 + $0x1c] sm:$0xf]
        %v699 = vld [vmem:[%s690 + $0x20] sm:$0xf]
        %v700 = vld [vmem:[%s690 + $0x24] sm:$0xf]
        %v701 = vld [vmem:[%s690 + $0x28] sm:$0xf]
        %v702 = vld [vmem:[%s690 + $0x2c] sm:$0xf]
        %v703 = vld [vmem:[%s690 + $0x30] sm:$0xf]
        %v704 = vld [vmem:[%s690 + $0x34] sm:$0xf]
        %v705 = vld [vmem:[%s690 + $0x38] sm:$0xf]
        %v706 = vld [vmem:[%s690 + $0x3c] sm:$0xf]
        %s707 = scalar_lea.vmem %s4, 3
        %v708 = vld [vmem:[%s707] sm:$0x1]
        %v709 = vpack.c.bf16 %v674, %v674
        %v711 = vperm.slane %v708, 0
        %v729 = vunpack.c.l.b16 %v691
        %v730 = vunpack.c.l.b16 %v692
        %v731 = vunpack.c.l.b16 %v693
        %v732 = vunpack.c.l.b16 %v694
        %v733 = vunpack.c.l.b16 %v695
        %v734 = vunpack.c.l.b16 %v696
        %v735 = vunpack.c.l.b16 %v697
        %v736 = vunpack.c.l.b16 %v698
        %v737 = vunpack.c.l.b16 %v699
        %v738 = vunpack.c.l.b16 %v700
        %v739 = vunpack.c.l.b16 %v701
        %v740 = vunpack.c.l.b16 %v702
        %v741 = vunpack.c.l.b16 %v703
        %v742 = vunpack.c.l.b16 %v704
        %v743 = vunpack.c.l.b16 %v705
        %v744 = vunpack.c.l.b16 %v706
        %v745 = vpack.c.b16 %v730, %v729
        %v746 = vpack.c.b16 %v732, %v731
        %v747 = vpack.c.b16 %v734, %v733
        %v748 = vpack.c.b16 %v736, %v735
        %v749 = vpack.c.b16 %v738, %v737
        %v750 = vpack.c.b16 %v740, %v739
        %v751 = vpack.c.b16 %v742, %v741
        %v752 = vpack.c.b16 %v744, %v743
        %761 = vmatpush.bf16.msra.mxu0 %v752
        %762 = vmatpush.bf16.msra.mxu0 %v751
        %763 = vmatpush.bf16.msra.mxu0 %v750
        %764 = vmatpush.bf16.msra.mxu0 %v749
        %765 = vmatpush.bf16.msra.mxu0 %v748
        %766 = vmatpush.bf16.msra.mxu0 %v747
        %767 = vmatpush.bf16.msra.mxu0 %v746
        %768 = vmatpush.bf16.msra.mxu0 %v745
        %769 = vmatmul.bf16.gmra.mxu0 %v709
        %v770 = vpop.f32.mrf.mxu0
        %v771 = vadd.f32 %v711, %v770
        %v772 = vpop.f32.mrf.mxu0
        %773 = vdwg.mxu0
        %v774 = vmax.f32 %v771, 0.0
        %v775 = vpack.c.bf16 %v689, %v689
        %776 = vmatpush.bf16.msra.mxu0 %v752
        %777 = vmatpush.bf16.msra.mxu0 %v751
        %778 = vmatpush.bf16.msra.mxu0 %v750
        %779 = vmatpush.bf16.msra.mxu0 %v749
        %780 = vmatpush.bf16.msra.mxu0 %v748
        %781 = vmatpush.bf16.msra.mxu0 %v747
        %782 = vmatpush.bf16.msra.mxu0 %v746
        %783 = vmatpush.bf16.msra.mxu0 %v745
        %784 = vmatmul.bf16.gmra.mxu0 %v775
        %v785 = vpop.f32.mrf.mxu0
        %v786 = vadd.f32 %v711, %v785
        %v787 = vpop.f32.mrf.mxu0
        %788 = vdwg.mxu0
        %v789 = vmax.f32 %v786, 0.0
        %s790 = scalar_lea.vmem [#allocation2], 256
        %v791 = vld [vmem:[%s790] sm:$0xf]
        %v792 = vld [vmem:[%s790 + $0x4] sm:$0xf]
        %v793 = vld [vmem:[%s790 + $0x8] sm:$0xf]
        %v794 = vld [vmem:[%s790 + $0xc] sm:$0xf]
        %v795 = vld [vmem:[%s790 + $0x10] sm:$0xf]
        %v796 = vld [vmem:[%s790 + $0x14] sm:$0xf]
        %v797 = vld [vmem:[%s790 + $0x18] sm:$0xf]
        %v798 = vld [vmem:[%s790 + $0x1c] sm:$0xf]
        %v799 = vld [vmem:[%s790 + $0x20] sm:$0xf]
        %v800 = vld [vmem:[%s790 + $0x24] sm:$0xf]
        %v801 = vld [vmem:[%s790 + $0x28] sm:$0xf]
        %v802 = vld [vmem:[%s790 + $0x2c] sm:$0xf]
        %v803 = vld [vmem:[%s790 + $0x30] sm:$0xf]
        %v804 = vld [vmem:[%s790 + $0x34] sm:$0xf]
        %v805 = vld [vmem:[%s790 + $0x38] sm:$0xf]
        %v806 = vld [vmem:[%s790 + $0x3c] sm:$0xf]
        %s807 = scalar_lea.vmem %s4, 4
        %v808 = vld [vmem:[%s807] sm:$0x1]
        %v809 = vpack.c.bf16 %v774, %v774
        %v811 = vperm.slane %v808, 0
        %v829 = vunpack.c.l.b16 %v791
        %v830 = vunpack.c.l.b16 %v792
        %v831 = vunpack.c.l.b16 %v793
        %v832 = vunpack.c.l.b16 %v794
        %v833 = vunpack.c.l.b16 %v795
        %v834 = vunpack.c.l.b16 %v796
        %v835 = vunpack.c.l.b16 %v797
        %v836 = vunpack.c.l.b16 %v798
        %v837 = vunpack.c.l.b16 %v799
        %v838 = vunpack.c.l.b16 %v800
        %v839 = vunpack.c.l.b16 %v801
        %v840 = vunpack.c.l.b16 %v802
        %v841 = vunpack.c.l.b16 %v803
        %v842 = vunpack.c.l.b16 %v804
        %v843 = vunpack.c.l.b16 %v805
        %v844 = vunpack.c.l.b16 %v806
        %v845 = vpack.c.b16 %v830, %v829
        %v846 = vpack.c.b16 %v832, %v831
        %v847 = vpack.c.b16 %v834, %v833
        %v848 = vpack.c.b16 %v836, %v835
        %v849 = vpack.c.b16 %v838, %v837
        %v850 = vpack.c.b16 %v840, %v839
        %v851 = vpack.c.b16 %v842, %v841
        %v852 = vpack.c.b16 %v844, %v843
        %861 = vmatpush.bf16.msra.mxu0 %v852
        %862 = vmatpush.bf16.msra.mxu0 %v851
        %863 = vmatpush.bf16.msra.mxu0 %v850
        %864 = vmatpush.bf16.msra.mxu0 %v849
        %865 = vmatpush.bf16.msra.mxu0 %v848
        %866 = vmatpush.bf16.msra.mxu0 %v847
        %867 = vmatpush.bf16.msra.mxu0 %v846
        %868 = vmatpush.bf16.msra.mxu0 %v845
        %869 = vmatmul.bf16.gmra.mxu0 %v809
        %v870 = vpop.f32.mrf.mxu0
        %v871 = vadd.f32 %v811, %v870
        %v872 = vpop.f32.mrf.mxu0
        %873 = vdwg.mxu0
        %v874 = vmax.f32 %v871, 0.0
        %v875 = vpack.c.bf16 %v789, %v789
        %876 = vmatpush.bf16.msra.mxu0 %v852
        %877 = vmatpush.bf16.msra.mxu0 %v851
        %878 = vmatpush.bf16.msra.mxu0 %v850
        %879 = vmatpush.bf16.msra.mxu0 %v849
        %880 = vmatpush.bf16.msra.mxu0 %v848
        %881 = vmatpush.bf16.msra.mxu0 %v847
        %882 = vmatpush.bf16.msra.mxu0 %v846
        %883 = vmatpush.bf16.msra.mxu0 %v845
        %884 = vmatmul.bf16.gmra.mxu0 %v875
        %v885 = vpop.f32.mrf.mxu0
        %v886 = vadd.f32 %v811, %v885
        %v887 = vpop.f32.mrf.mxu0
        %888 = vdwg.mxu0
        %v889 = vmax.f32 %v886, 0.0
        %v890 = vpack.c.bf16 %v874, %v874
        %v892 = vperm.slane %v337, 0
        %v910 = vunpack.c.l.b16 %v321
        %v911 = vunpack.c.l.b16 %v322
        %v912 = vunpack.c.l.b16 %v323
        %v913 = vunpack.c.l.b16 %v324
        %v914 = vunpack.c.l.b16 %v325
        %v915 = vunpack.c.l.b16 %v326
        %v916 = vunpack.c.l.b16 %v327
        %v917 = vunpack.c.l.b16 %v328
        %v918 = vunpack.c.l.b16 %v329
        %v919 = vunpack.c.l.b16 %v330
        %v920 = vunpack.c.l.b16 %v331
        %v921 = vunpack.c.l.b16 %v332
        %v922 = vunpack.c.l.b16 %v333
        %v923 = vunpack.c.l.b16 %v334
        %v924 = vunpack.c.l.b16 %v335
        %v925 = vunpack.c.l.b16 %v336
        %v926 = vpack.c.b16 %v911, %v910
        %v927 = vpack.c.b16 %v913, %v912
        %v928 = vpack.c.b16 %v915, %v914
        %v929 = vpack.c.b16 %v917, %v916
        %v930 = vpack.c.b16 %v919, %v918
        %v931 = vpack.c.b16 %v921, %v920
        %v932 = vpack.c.b16 %v923, %v922
        %v933 = vpack.c.b16 %v925, %v924
        %942 = vmatpush.bf16.msra.mxu0 %v933
        %943 = vmatpush.bf16.msra.mxu0 %v932
        %944 = vmatpush.bf16.msra.mxu0 %v931
        %945 = vmatpush.bf16.msra.mxu0 %v930
        %946 = vmatpush.bf16.msra.mxu0 %v929
        %947 = vmatpush.bf16.msra.mxu0 %v928
        %948 = vmatpush.bf16.msra.mxu0 %v927
        %949 = vmatpush.bf16.msra.mxu0 %v926
        %950 = vmatmul.bf16.gmra.mxu0 %v890
        %v951 = vpop.f32.mrf.mxu0
        %v952 = vadd.f32 %v892, %v951
        %v953 = vpop.f32.mrf.mxu0
        %954 = vdwg.mxu0
        %vm955 = vcmask 23552
        %956 = vst.msk [vmem:[%s297] sm:$0xff] %vm955, %v952
        %v957 = vpack.c.bf16 %v889, %v889
        %958 = vmatpush.bf16.msra.mxu0 %v933
        %959 = vmatpush.bf16.msra.mxu0 %v932
        %960 = vmatpush.bf16.msra.mxu0 %v931
        %961 = vmatpush.bf16.msra.mxu0 %v930
        %962 = vmatpush.bf16.msra.mxu0 %v929
        %963 = vmatpush.bf16.msra.mxu0 %v928
        %964 = vmatpush.bf16.msra.mxu0 %v927
        %965 = vmatpush.bf16.msra.mxu0 %v926
        %966 = vmatmul.bf16.gmra.mxu0 %v957
        %v967 = vpop.f32.mrf.mxu0
        %v968 = vadd.f32 %v892, %v967
        %v969 = vpop.f32.mrf.mxu0
        %970 = vdwg.mxu0
        %971 = vst.msk [vmem:[%s297 + $0x8] sm:$0xff] %vm955, %v968
        %s972 = sand.u32 %s179, 1
        %s973 = sand.u32 %s179, 1
        %s974 = smul.addr %s973, 16
        %s975 = scalar_lea.vmem [#allocation4], %s974
        // Predicated region
        $region53: #{mlp_forward.1} parent=47 // pred_check
          %p976 = pneg %p189
        $region54: #{mlp_forward.1} parent=47 // pred_check_branch
          %978 = sbr.rel (%p976) target = $region56
        $region55: #{mlp_forward.1} parent=47 // pred_region
          %s979 = smul.u32 2, %s19
          %s980 = ssub.s32 5, %s979
          %p981 = scmp.lt.s32.totalorder %s980, 2
          %s982 = scalar_select %p981, %s980, 2
          %s983 = smul.u32 8, %s982
          %p984 = scmp.ne.s32.totalorder 0, %s983
          %s985 = smul.addr %s979, 8
          %s986 = scalar_lea.vmem %s7, %s985
          // Predicated region
          $region57: #{mlp_forward.1} parent=55 // pred_check
            %p987 = pneg %p984
          $region58: #{mlp_forward.1} parent=55 // pred_check_branch
            %989 = sbr.rel (%p987) target = $region60
          $region59: #{mlp_forward.1} parent=55 // pred_region
            // Predicated region
            $region61: #{mlp_forward.1} parent=59 // pred_check
              _
            $region62: #{mlp_forward.1} parent=59 // pred_check_branch
              %991 = sbr.rel (0) target = $region64
            $region63: #{mlp_forward.1} parent=59 // pred_region
              // Predicated region
              $region83: #{mlp_forward.1} parent=63 // pred_check
                _
              $region84: #{mlp_forward.1} parent=63 // pred_check_branch
                %1043 = sbr.rel (0) target = $region86
              $region85: #{mlp_forward.1} parent=63 // pred_region
                %s1044 = sshrl.u32 %s982, 1
                // While loop
                $region87: #{mlp_forward.1} parent=85 // loop_pre_header
                  _
                $region88: #{mlp_forward.1} parent=85 // loop_header
                  %s1046 = sphi 0, %s1048
                  %p1047 = scmp.ge.s32.totalorder %s1046, %s1044
                  %s1051 = sphi 0, %s1060
                  %s1052 = sphi %s975, %s1063
                  %s1053 = sphi %s986, %s1064
                $region89: #{mlp_forward.1} parent=85 // loop_header_branch
                  %1050 = sbr.rel (%p1047) target = $region93
                $region90: #{mlp_forward.1} parent=85 // loop_body
                  %v1054 = vld [vmem:[%s1052] sm:$0xff]
                  %1055 = vst [vmem:[%s1053] sm:$0xff] %v1054
                  %v1056 = vld [vmem:[%s1052 + $0x8] sm:$0xff]
                  %1057 = vst [vmem:[%s1053 + $0x8] sm:$0xff] %v1056
                  %s1058 = sadd.s32 1, %s1051
                  %p1059 = scmp.ge.s32.totalorder %s1058, %s1044
                  %s1060 = scalar_select %p1059, 0, %s1058
                  %s1061 = smul.u32 %s1060, 16
                  %s1062 = smul.u32 %s1060, 16
                  %s1063 = scalar_lea.vmem %s975, %s1061 [#allocation4]
                  %s1064 = scalar_lea.vmem %s986, %s1062
                $region91: #{mlp_forward.1} parent=85 // loop_footer
                  %s1048 = sadd.s32 %s1046, 1
                $region92: #{mlp_forward.1} parent=85 // loop_footer_branch
                  %1045 = sbr.rel target = $region88
                $region93: #{mlp_forward.1} parent=85 // loop_exit
                  _
                %s1065 = sshrl.u32 %s982, 1
                %s1066 = sand.u32 %s982, 1
                %s1067 = smul.u32 %s1065, 2
                %s1068 = smul.u32 8, %s1067
                %s1069 = scalar_lea.vmem %s975, %s1068 [#allocation4]
                %s1070 = smul.u32 8, %s1067
                %s1071 = scalar_lea.vmem %s986, %s1070
                // While loop
                $region94: #{mlp_forward.1} parent=85 // loop_pre_header
                  _
                $region95: #{mlp_forward.1} parent=85 // loop_header
                  %s1073 = sphi 0, %s1075
                  %p1074 = scmp.ge.s32.totalorder %s1073, %s1066
                  %s1078 = sphi 0, %s1085
                  %s1079 = sphi %s1069, %s1088
                  %s1080 = sphi %s1071, %s1089
                $region96: #{mlp_forward.1} parent=85 // loop_header_branch
                  %1077 = sbr.rel (%p1074) target = $region100
                $region97: #{mlp_forward.1} parent=85 // loop_body
                  %v1081 = vld [vmem:[%s1079] sm:$0xff]
                  %1082 = vst [vmem:[%s1080] sm:$0xff] %v1081
                  %s1083 = sadd.s32 1, %s1078
                  %p1084 = scmp.ge.s32.totalorder %s1083, %s1066
                  %s1085 = scalar_select %p1084, 0, %s1083
                  %s1086 = smul.u32 %s1085, 8
                  %s1087 = smul.u32 %s1085, 8
                  %s1088 = scalar_lea.vmem %s1069, %s1086 [#allocation4]
                  %s1089 = scalar_lea.vmem %s1071, %s1087
                $region98: #{mlp_forward.1} parent=85 // loop_footer
                  %s1075 = sadd.s32 %s1073, 1
                $region99: #{mlp_forward.1} parent=85 // loop_footer_branch
                  %1072 = sbr.rel target = $region95
                $region100: #{mlp_forward.1} parent=85 // loop_exit
                  _
              $region86: #{mlp_forward.1} parent=63 // pred_fallthru
                _
              // Predicated region
              $region101: #{mlp_forward.1} parent=63 // pred_check
                _
              $region102: #{mlp_forward.1} parent=63 // pred_check_branch
                %1091 = sbr.rel target = $region104
              $region103: #{mlp_forward.1} parent=63 // pred_region
                _
              $region104: #{mlp_forward.1} parent=63 // pred_fallthru
                _
            $region64: #{mlp_forward.1} parent=59 // pred_fallthru
              _
            // Predicated region
            $region65: #{mlp_forward.1} parent=59 // pred_check
              _
            $region66: #{mlp_forward.1} parent=59 // pred_check_branch
              %993 = sbr.rel target = $region68
            $region67: #{mlp_forward.1} parent=59 // pred_region
              %s995 = ssub.s32 256, 1
              %s996 = sshrl.u32 %s982, 1
              // While loop
              $region69: #{mlp_forward.1} parent=67 // loop_pre_header
                _
              $region70: #{mlp_forward.1} parent=67 // loop_header
                %s998 = sphi 0, %s1000
                %p999 = scmp.ge.s32.totalorder %s998, %s996
                %s1003 = sphi 0, %s1012
                %s1004 = sphi %s975, %s1015
                %s1005 = sphi %s986, %s1016
              $region71: #{mlp_forward.1} parent=67 // loop_header_branch
                %1002 = sbr.rel (%p999) target = $region75
              $region72: #{mlp_forward.1} parent=67 // loop_body
                %v1006 = vld [vmem:[%s1004] sm:%s995]
                %1007 = vst [vmem:[%s1005] sm:%s995] %v1006
                %v1008 = vld [vmem:[%s1004 + $0x8] sm:%s995]
                %1009 = vst [vmem:[%s1005 + $0x8] sm:%s995] %v1008
                %s1010 = sadd.s32 1, %s1003
                %p1011 = scmp.ge.s32.totalorder %s1010, %s996
                %s1012 = scalar_select %p1011, 0, %s1010
                %s1013 = smul.u32 %s1012, 16
                %s1014 = smul.u32 %s1012, 16
                %s1015 = scalar_lea.vmem %s975, %s1013 [#allocation4]
                %s1016 = scalar_lea.vmem %s986, %s1014
              $region73: #{mlp_forward.1} parent=67 // loop_footer
                %s1000 = sadd.s32 %s998, 1
              $region74: #{mlp_forward.1} parent=67 // loop_footer_branch
                %997 = sbr.rel target = $region70
              $region75: #{mlp_forward.1} parent=67 // loop_exit
                _
              %s1017 = sshrl.u32 %s982, 1
              %s1018 = sand.u32 %s982, 1
              %s1019 = smul.u32 %s1017, 2
              %s1020 = smul.u32 8, %s1019
              %s1021 = scalar_lea.vmem %s975, %s1020 [#allocation4]
              %s1022 = smul.u32 8, %s1019
              %s1023 = scalar_lea.vmem %s986, %s1022
              // While loop
              $region76: #{mlp_forward.1} parent=67 // loop_pre_header
                _
              $region77: #{mlp_forward.1} parent=67 // loop_header
                %s1025 = sphi 0, %s1027
                %p1026 = scmp.ge.s32.totalorder %s1025, %s1018
                %s1030 = sphi 0, %s1037
                %s1031 = sphi %s1021, %s1040
                %s1032 = sphi %s1023, %s1041
              $region78: #{mlp_forward.1} parent=67 // loop_header_branch
                %1029 = sbr.rel (%p1026) target = $region82
              $region79: #{mlp_forward.1} parent=67 // loop_body
                %v1033 = vld [vmem:[%s1031] sm:%s995]
                %1034 = vst [vmem:[%s1032] sm:%s995] %v1033
                %s1035 = sadd.s32 1, %s1030
                %p1036 = scmp.ge.s32.totalorder %s1035, %s1018
                %s1037 = scalar_select %p1036, 0, %s1035
                %s1038 = smul.u32 %s1037, 8
                %s1039 = smul.u32 %s1037, 8
                %s1040 = scalar_lea.vmem %s1021, %s1038 [#allocation4]
                %s1041 = scalar_lea.vmem %s1023, %s1039
              $region80: #{mlp_forward.1} parent=67 // loop_footer
                %s1027 = sadd.s32 %s1025, 1
              $region81: #{mlp_forward.1} parent=67 // loop_footer_branch
                %1024 = sbr.rel target = $region77
              $region82: #{mlp_forward.1} parent=67 // loop_exit
                _
            $region68: #{mlp_forward.1} parent=59 // pred_fallthru
              _
          $region60: #{mlp_forward.1} parent=55 // pred_fallthru
            _
          %1092 = vnop
        $region56: #{mlp_forward.1} parent=47 // pred_fallthru
          _
      $region48: #{mlp_forward.1} parent=5 // pred_fallthru
        _
      %p1093 = scmp.le.s32.totalorder 2, %s14
      // Predicated region
      $region105: #{mlp_forward.1} parent=5 // pred_check
        %p1094 = pneg %p1093
      $region106: #{mlp_forward.1} parent=5 // pred_check_branch
        %1096 = sbr.rel (%p1094) target = $region108
      $region107: #{mlp_forward.1} parent=5 // pred_region
        %s1097 = ssub.s32 %s14, 2
        // Predicated region
        $region109: #{mlp_forward.1} parent=107 // pred_check
          %p1098 = pneg %p195
        $region110: #{mlp_forward.1} parent=107 // pred_check_branch
          %1100 = sbr.rel (%p1098) target = $region112
        $region111: #{mlp_forward.1} parent=107 // pred_region
          %s1101 = sand.u32 %s180, 1
          %s1102 = sand.u32 %s180, 1
          %s1103 = smul.addr %s1102, 16
          %s1104 = scalar_lea.vmem [#allocation4], %s1103
        $region112: #{mlp_forward.1} parent=107 // pred_fallthru
          _
      $region108: #{mlp_forward.1} parent=5 // pred_fallthru
        _
    $region6: #{mlp_forward.1} parent=1 // loop_footer
      %s18 = sadd.s32 1, %s14
    $region7: #{mlp_forward.1} parent=1 // loop_footer_branch
      %13 = sbr.rel target = $region3
    $region8: #{mlp_forward.1} parent=1 // loop_exit
      _
    %1105 = vsyncpa [#allocation3], 1
    %s1106 = scalar_lea.sflag [#allocation3], 1
    %1107 = vsyncpa %s1106, 1

</llo_original>
